<compile_context>
chip_gen: v5e
topology: v5e:2x2
jax: 0.10.0
libtpu: 0.0.40
codegen_flags: <defaults>
</compile_context>

<pallas_src>
import math

import jax
import jax.numpy as jnp
from jax import lax
from jax.experimental import pallas as pl
from jax.experimental.pallas import tpu as pltpu


def _round_up(x, m):
    return ((x + m - 1) // m) * m


def _cdiv(a, b):
    return (a + b - 1) // b


def _vmem_budget_bytes():
    """Per-kernel VMEM budget used for tile / batch-fold sizing."""
    try:
        info = pltpu.get_tpu_info()
        phys = int(info.vmem_capacity_bytes)
        return max(32 << 20, min(phys * 3 // 4, 96 << 20))
    except Exception:
        # Conservative default: fits v7x's 64 MiB physical VMEM with headroom
        # and is far below v5e/v6e's 128 MiB.
        return 48 << 20


def _vmem_usage(bb, tr1, tr2, d1, d2, isz, weight_bytes):
    """Estimated per-step VMEM footprint (bytes) for a (bb, tr1, tr2) tiling."""
    dbl = 2  # BlockSpec double buffering
    total = dbl * bb * tr1 * d1 * isz          # mat1 tile
    total += dbl * bb * tr2 * d2 * isz         # mat2 tile
    total += dbl * bb * tr1 * tr2 * isz        # output tile
    total += bb * tr1 * d2 * isz               # cached intermediate (single copy)
    total += bb * tr1 * 128 * 4                # column-vector scratch (lane padded)
    return total + weight_bytes + (1 << 20)    # resident weight + fudge


def _bilinear_kernel(m1_ref, m2_ref, w_ref, bias_ref, o_ref, inter_ref):
    # m1_ref   : (BB, TR1, D1)   mat1 tile (BB batch elements x TR1 rows)
    # m2_ref   : (BB, TR2, D2)   mat2 tile
    # w_ref    : (1, D1, D2)     whole weight, resident in VMEM (single copy)
    # bias_ref : (1,)            f32 scalar in SMEM
    # o_ref    : (BB, TR1, TR2)  output tile
    # inter_ref: (BB, TR1, D2)   VMEM scratch caching  mat1 @ W  across R2 tiles
    j = pl.program_id(2)

    @pl.when(j == 0)
    def _():
        bb, tr1, d1 = m1_ref.shape
        # Fold batch into rows: one large (BB*TR1, D1) x (D1, D2) MXU matmul
        # instead of BB skinny ones.
        m1_2d = m1_ref[...].reshape(bb * tr1, d1)
        inter = jnp.dot(m1_2d, w_ref[0], preferred_element_type=jnp.float32)
        inter_ref[...] = inter.reshape(bb, tr1, -1).astype(inter_ref.dtype)

    # Second matmul: contract the feature dim of BOTH operands (trans-B
    # contraction) -- no materialized transpose of m2.
    out = lax.dot_general(
        inter_ref[...], m2_ref[...],
        dimension_numbers=(((2,), (2,)), ((0,), (0,))),
        preferred_element_type=jnp.float32)
    o_ref[...] = (out + bias_ref[0]).astype(o_ref.dtype)


def _bilinear_aug_kernel(m1_ref, m2_ref, w_ref, wcol_ref, wrow_ref, bias_ref,
                         o_ref, inter_ref, u_ref):
    # use_input_biases path WITHOUT concatenating ones columns:
    #   [X,1] W' [Y,1]^T = (X Wc + 1 r^T) Y^T + (X c) 1^T + s
    # r is folded into the cached intermediate, u = X c is cached as a column
    # vector, and s (+ module bias) lives in the SMEM scalar.
    j = pl.program_id(2)

    @pl.when(j == 0)
    def _():
        bb, tr1, d1 = m1_ref.shape
        m1 = m1_ref[...]
        m1_2d = m1.reshape(bb * tr1, d1)
        inter = jnp.dot(m1_2d, w_ref[0], preferred_element_type=jnp.float32)
        inter = inter + wrow_ref[...].astype(jnp.float32)        # + 1 r^T
        inter_ref[...] = inter.reshape(bb, tr1, -1).astype(inter_ref.dtype)
        # u = X @ c  (column vector, reused for every R2 tile).
        u = jnp.sum(m1.astype(jnp.float32)
                    * wcol_ref[...].astype(jnp.float32),         # (1, D1) bcast
                    axis=-1, keepdims=True)                      # (BB, TR1, 1)
        u_ref[...] = u

    out = lax.dot_general(
        inter_ref[...], m2_ref[...],
        dimension_numbers=(((2,), (2,)), ((0,), (0,))),
        preferred_element_type=jnp.float32)
    o_ref[...] = (out + u_ref[...] + bias_ref[0]).astype(o_ref.dtype)


def bilinear_attention(mat1, mat2, weight, bias, use_input_biases=False,
                       mxu_dtype=None):
    """Computes mat1 @ W @ mat2^T + bias  (PyTorch BilinearAttention.forward).

    mat1: (B, R1, D1), mat2: (B, R2, D2), weight: (1, D1[+1], D2[+1]),
    bias: (1,).  Returns (B, R1, R2).

    mxu_dtype: optional dtype (e.g. jnp.bfloat16) to run the MXU matmuls in;
    accumulation stays f32.  Default None = input dtype (reference-faithful).
    """
    B, R1, D1 = mat1.shape
    B2, R2, D2 = mat2.shape
    assert B2 == B, f"batch mismatch: {B} vs {B2}"
    exp_w = (1, D1 + int(use_input_biases), D2 + int(use_input_biases))
    assert weight.shape == exp_w, f"weight shape {weight.shape} != {exp_w}"

    out_dtype = jnp.result_type(mat1.dtype, mat2.dtype)
    compute_dtype = jnp.dtype(out_dtype if mxu_dtype is None else mxu_dtype)

    # Split the augmented weight instead of concatenating ones columns onto the
    # inputs (avoids an HBM copy of both inputs and keeps K lane-aligned).
    if use_input_biases:
        w_core = weight[:, :D1, :D2]
        w_col = weight[0, :D1, D2].reshape(1, D1)     # multiplies mat1 rows
        w_row = weight[0, D1, :D2].reshape(1, D2)     # multiplies mat2 rows
        bias_eff = (bias.reshape(-1)[:1].astype(jnp.float32)
                    + weight[0, D1, D2].astype(jnp.float32))
    else:
        w_core = weight
        w_col = w_row = None
        bias_eff = bias.reshape(-1)[:1].astype(jnp.float32)

    # For skinny R1 compute the transposed bilinear so the larger row count
    # supplies the per-batch M of the dominant second GEMM.
    swapped = (R1 < 128) and (R2 > R1)
    if swapped:
        mat1, mat2 = mat2, mat1
        w_core = jnp.swapaxes(w_core, -1, -2)
        if use_input_biases:
            w_col, w_row = w_row, w_col
        R1, R2, D1, D2 = R2, R1, D2, D1

    mat1 = mat1.astype(compute_dtype)
    mat2 = mat2.astype(compute_dtype)
    w_core = w_core.astype(compute_dtype)
    if use_input_biases:
        w_col = w_col.astype(compute_dtype)
        w_row = w_row.astype(compute_dtype)

    isz = jnp.dtype(compute_dtype).itemsize
    pack = {1: 32, 2: 16, 4: 8}.get(isz, 8)   # packed sublane tile

    # ---- VMEM-aware tile / batch-fold selection -----------------------------
    budget = _vmem_budget_bytes()
    weight_bytes = D1 * D2 * isz
    if weight_bytes > budget - (8 << 20):
        # TODO(synk): K-tile the resident weight over D1 (reduction grid axis +
        # f32 accumulator for the intermediate) for very large D1*D2.
        raise NotImplementedError(
            f"resident weight ({weight_bytes / 2**20:.1f} MiB) exceeds the "
            f"VMEM budget ({budget / 2**20:.1f} MiB)")

    # Candidate tiles ordered by (least padding, then largest tile).
    tr1_base = _round_up(min(R1, 512), pack)
    tr1_cands = sorted({tr1_base} | {c for c in (512, 256, 128) if c <= tr1_base},
                       key=lambda c: (_round_up(R1, c), -c))
    tr2_cands = sorted((512, 256, 128),
                       key=lambda c: (_round_up(R2, c), -c))

    choice = None
    for tr1 in tr1_cands:
        for tr2 in tr2_cands:
            bb = max(1, min(B, max(1, 512 // tr1)))   # fold batch: first GEMM M ~ 512
            while bb > 1 and _vmem_usage(bb, tr1, tr2, D1, D2, isz,
                                         weight_bytes) > budget:
                bb -= 1
            if _vmem_usage(bb, tr1, tr2, D1, D2, isz, weight_bytes) <= budget:
                choice = (bb, tr1, tr2)
                break
        if choice is not None:
            break
    if choice is None:
        raise NotImplementedError(
            "no (bb, tr1, tr2) tiling fits the VMEM budget; see K-tiling TODO")
    bb, tr1, tr2 = choice

    r1p = _round_up(R1, tr1)
    r2p = _round_up(R2, tr2)
    ni = r1p // tr1
    # v7x megacore: keep the product of the two 'parallel' grid axes >= 2.
    if B >= 2 and _cdiv(B, bb) * ni < 2:
        bb = (B + 1) // 2
    nb = _cdiv(B, bb)
    bp = nb * bb
    grid = (nb, ni, r2p // tr2)

    usage = _vmem_usage(bb, tr1, tr2, D1, D2, isz, weight_bytes)
    vmem_limit = int(min(budget, max(usage + (8 << 20), 32 << 20)))

    out_isz = jnp.dtype(out_dtype).itemsize
    flops = 2 * bp * r1p * D1 * D2 + 2 * bp * r1p * r2p * D2
    bytes_accessed = int(bp * r1p * D1 * isz + bp * r2p * D2 * isz * ni
                         + weight_bytes + bp * r1p * r2p * out_isz)

    in_specs = [
        # mat1 tile depends on (batch-tile, R1-tile) only: read once per (b,i).
        pl.BlockSpec((bb, tr1, D1), lambda b, i, j: (b, i, 0)),
        # mat2 tile depends on (batch-tile, R2-tile): re-streamed per R1 tile.
        pl.BlockSpec((bb, tr2, D2), lambda b, i, j: (b, j, 0)),
        # Batch-invariant weight: single resident VMEM copy (no per-step DMA).
        pl.BlockSpec(memory_space=pltpu.MemorySpace.VMEM),
    ]
    scratch = [pltpu.VMEM((bb, tr1, D2), compute_dtype)]
    if use_input_biases:
        kernel = _bilinear_aug_kernel
        in_specs += [
            pl.BlockSpec(memory_space=pltpu.MemorySpace.VMEM),   # w_col (1, D1)
            pl.BlockSpec(memory_space=pltpu.MemorySpace.VMEM),   # w_row (1, D2)
            pl.BlockSpec(memory_space=pltpu.MemorySpace.SMEM),   # scalar bias
        ]
        scratch += [pltpu.VMEM((bb, tr1, 1), jnp.float32)]
        operands = (mat1, mat2, w_core, w_col, w_row, bias_eff)
    else:
        kernel = _bilinear_kernel
        in_specs += [pl.BlockSpec(memory_space=pltpu.MemorySpace.SMEM)]
        operands = (mat1, mat2, w_core, bias_eff)

    grid_spec = pltpu.PrefetchScalarGridSpec(
        num_scalar_prefetch=0,
        grid=grid,
        in_specs=in_specs,
        out_specs=pl.BlockSpec((bb, tr1, tr2), lambda b, i, j: (b, i, j)),
        scratch_shapes=scratch,
    )

    out_padded = pl.pallas_call(
        kernel,
        # Inputs are NOT padded: boundary blocks read garbage that only lands
        # in output rows/cols/batches which are sliced off below.  Only the
        # output is allocated padded so stores stay lane-dense.
        out_shape=jax.ShapeDtypeStruct((bp, r1p, r2p), out_dtype),
        grid_spec=grid_spec,
        compiler_params=pltpu.CompilerParams(
            # batch / R1-tile axes are independent (megacore-parallel); the
            # R2-tile axis is 'arbitrary' because the cached intermediate is
            # written at j == 0 and reused for j > 0.
            dimension_semantics=("parallel", "parallel", "arbitrary"),
            vmem_limit_bytes=vmem_limit,
        ),
        cost_estimate=pl.CostEstimate(
            flops=flops, transcendentals=0, bytes_accessed=bytes_accessed),
    )(*operands)

    out = out_padded[:B, :R1, :R2]
    if swapped:
        out = jnp.transpose(out, (0, 2, 1))
    return out


def init_params(key, mat1_dim, mat2_dim, use_input_biases=False):
    """Deterministic parameter init matching the PyTorch module's __init__."""
    d1, d2 = mat1_dim, mat2_dim
    if use_input_biases:
        d1 += 1
        d2 += 1
    limit = math.sqrt(6.0 / (d1 + d2))   # xavier_uniform_ on (1, d1, d2)
    weight = jax.random.uniform(
        key, (1, d1, d2), jnp.float32, minval=-limit, maxval=limit
    )
    bias = jnp.zeros((1,), jnp.float32)
    return weight, bias


def _reference(mat1, mat2, weight, bias, use_input_biases):
    if use_input_biases:
        ones1 = jnp.ones(mat1.shape[:-1] + (1,), mat1.dtype)
        ones2 = jnp.ones(mat2.shape[:-1] + (1,), mat2.dtype)
        mat1 = jnp.concatenate([mat1, ones1], axis=-1)
        mat2 = jnp.concatenate([mat2, ones2], axis=-1)
    return jnp.einsum(
        "brd,de,bse->brs", mat1, weight[0], mat2,
        precision=lax.Precision.HIGHEST) + bias[0]


if __name__ == "__main__":
    key = jax.random.PRNGKey(0)

    test_cases = [
        # (B, R1,  R2,  D1, D2, use_input_biases)
        (2,   8,   8,  32, 32, False),
        (2,   8,   8,  32, 32, True),
        (3, 300, 200,  64, 96, False),   # boundary blocks + multi-batch grid
        (2,   8, 200,  32, 64, True),    # skinny R1 -> transposed (swapped) path
    ]

    for (B, R1, R2, D1, D2, uib) in test_cases:
        key, k1, k2, kw = jax.random.split(key, 4)
        mat1 = jax.random.normal(k1, (B, R1, D1), jnp.float32)
        mat2 = jax.random.normal(k2, (B, R2, D2), jnp.float32)
        weight, bias = init_params(kw, D1, D2, uib)
        bias = bias + 0.25   # nonzero so the bias add is actually exercised

        out = bilinear_attention(mat1, mat2, weight, bias, uib)
        out = jax.block_until_ready(out)

        ref = _reference(mat1, mat2, weight, bias, uib)
        assert out.shape == (B, R1, R2), (out.shape, (B, R1, R2))

        scale = float(jnp.max(jnp.abs(ref)))
        max_err = float(jnp.max(jnp.abs(out - ref)))
        assert max_err <= 2e-2 * scale + 1e-4, (
            f"mismatch: max_err={max_err} scale={scale} "
            f"case={(B, R1, R2, D1, D2, uib)}")

    print("KERNEL_OK")
</pallas_src>

<mosaic_0001>
module attributes {stable_mosaic.version = 11 : i64} {
  func.func @_bilinear_kernel(%arg0: i32, %arg1: i32, %arg2: i32, %arg3: memref<1x8x32xf32, #tpu.memory_space<vmem>>, %arg4: memref<1x128x32xf32, #tpu.memory_space<vmem>>, %arg5: memref<1x32x32xf32, #tpu.memory_space<vmem>>, %arg6: memref<1xf32, #tpu.memory_space<smem>>, %arg7: memref<1x8x128xf32, #tpu.memory_space<vmem>>, %arg8: memref<1x8x32xf32, #tpu.memory_space<vmem>>) attributes {dimension_semantics = [#tpu.dimension_semantics<parallel>, #tpu.dimension_semantics<parallel>, #tpu.dimension_semantics<arbitrary>], iteration_bounds = array<i64: 2, 1, 1>, scalar_prefetch = 0 : i64, scratch_operands = 1 : i64, tpu.core_type = #tpu.core_type<tc>, window_params = [{transform_indices = @transform_0, window_bounds = array<i64: 1, 8, 32>}, {transform_indices = @transform_1, window_bounds = array<i64: 1, 128, 32>}, {pipeline_mode = #tpu.pipeline_mode<synchronous>, transform_indices = @transform_2, window_bounds = array<i64: 1, 32, 32>}, {transform_indices = @transform_3, window_bounds = array<i64: 1>}, {transform_indices = @transform_4, window_bounds = array<i64: 1, 8, 128>}]} {
    %c0_i32 = arith.constant 0 : i32
    %0 = arith.cmpi eq, %arg2, %c0_i32 : i32
    %1 = arith.extui %0 : i1 to i32
    %c0_i32_0 = arith.constant 0 : i32
    %2 = arith.cmpi ne, %1, %c0_i32_0 : i32
    scf.if %2 {
      %c0_10 = arith.constant 0 : index
      %c0_11 = arith.constant 0 : index
      %c0_12 = arith.constant 0 : index
      %10 = vector.load %arg3[%c0_10, %c0_11, %c0_12] : memref<1x8x32xf32, #tpu.memory_space<vmem>>, vector<1x8x32xf32>
      %11 = vector.shape_cast %10 : vector<1x8x32xf32> to vector<8x32xf32>
      %c0_13 = arith.constant 0 : index
      %c0_14 = arith.constant 0 : index
      %c0_15 = arith.constant 0 : index
      %12 = vector.load %arg5[%c0_13, %c0_14, %c0_15] : memref<1x32x32xf32, #tpu.memory_space<vmem>>, vector<1x32x32xf32>
      %13 = vector.shape_cast %12 : vector<1x32x32xf32> to vector<32x32xf32>
      %cst_16 = arith.constant dense<0.000000e+00> : vector<8x32xf32>
      %14 = tpu.matmul %11, %13, %cst_16 {dimension_numbers = #tpu.dot_dimension_numbers<[1], [0], [0], [1], [0, 0, 1, 1], [], []>} : vector<8x32xf32>, vector<32x32xf32>, vector<8x32xf32> -> vector<8x32xf32>
      %15 = vector.shape_cast %14 : vector<8x32xf32> to vector<1x8x32xf32>
      %c0_17 = arith.constant 0 : index
      %c0_18 = arith.constant 0 : index
      %c0_19 = arith.constant 0 : index
      %16 = vector.load %arg8[%c0_17, %c0_18, %c0_19] : memref<1x8x32xf32, #tpu.memory_space<vmem>>, vector<1x8x32xf32>
      tpu.vector_store %arg8[%c0_17, %c0_18, %c0_19], %15 {strides = array<i32>} : memref<1x8x32xf32, #tpu.memory_space<vmem>>, vector<1x8x32xf32>,
    } else {
    }
    %c0 = arith.constant 0 : index
    %c0_1 = arith.constant 0 : index
    %c0_2 = arith.constant 0 : index
    %3 = vector.load %arg8[%c0, %c0_1, %c0_2] : memref<1x8x32xf32, #tpu.memory_space<vmem>>, vector<1x8x32xf32>
    %c0_3 = arith.constant 0 : index
    %c0_4 = arith.constant 0 : index
    %c0_5 = arith.constant 0 : index
    %4 = vector.load %arg4[%c0_3, %c0_4, %c0_5] : memref<1x128x32xf32, #tpu.memory_space<vmem>>, vector<1x128x32xf32>
    %cst = arith.constant dense<0.000000e+00> : vector<1x8x128xf32>
    %5 = tpu.matmul %3, %4, %cst {dimension_numbers = #tpu.dot_dimension_numbers<[2], [2], [1], [1], [0, 0, 0, 1, 1, 1], [0], [0]>} : vector<1x8x32xf32>, vector<1x128x32xf32>, vector<1x8x128xf32> -> vector<1x8x128xf32>
    %c0_6 = arith.constant 0 : index
    %6 = memref.load %arg6[%c0_6] : memref<1xf32, #tpu.memory_space<smem>>
    %7 = vector.broadcast %6 : f32 to vector<1x8x128xf32>
    %8 = arith.addf %5, %7 : vector<1x8x128xf32>
    %c0_7 = arith.constant 0 : index
    %c0_8 = arith.constant 0 : index
    %c0_9 = arith.constant 0 : index
    %9 = vector.load %arg7[%c0_7, %c0_8, %c0_9] : memref<1x8x128xf32, #tpu.memory_space<vmem>>, vector<1x8x128xf32>
    tpu.vector_store %arg7[%c0_7, %c0_8, %c0_9], %8 {strides = array<i32>} : memref<1x8x128xf32, #tpu.memory_space<vmem>>, vector<1x8x128xf32>,
    return
  }
  func.func @transform_0(%arg0: i32, %arg1: i32, %arg2: i32) -> (i32, i32, i32) {
    %c0_i32 = arith.constant 0 : i32
    %c0_i32_0 = arith.constant 0 : i32
    return %arg0, %arg1, %c0_i32 : i32, i32, i32
  }
  func.func @transform_1(%arg0: i32, %arg1: i32, %arg2: i32) -> (i32, i32, i32) {
    %c0_i32 = arith.constant 0 : i32
    %c0_i32_0 = arith.constant 0 : i32
    return %arg0, %arg2, %c0_i32 : i32, i32, i32
  }
  func.func @transform_2(%arg0: i32, %arg1: i32, %arg2: i32) -> (i32, i32, i32) {
    %c0_i32 = arith.constant 0 : i32
    %c0_i32_0 = arith.constant 0 : i32
    %c0_i32_1 = arith.constant 0 : i32
    %c0_i32_2 = arith.constant 0 : i32
    return %c0_i32, %c0_i32_0, %c0_i32_1 : i32, i32, i32
  }
  func.func @transform_3(%arg0: i32, %arg1: i32, %arg2: i32) -> i32 {
    %c0_i32 = arith.constant 0 : i32
    %c0_i32_0 = arith.constant 0 : i32
    return %c0_i32 : i32
  }
  func.func @transform_4(%arg0: i32, %arg1: i32, %arg2: i32) -> (i32, i32, i32) {
    %c0_i32 = arith.constant 0 : i32
    return %arg0, %arg1, %arg2 : i32, i32, i32
  }
}

</mosaic_0001>

<llo_original>
// kernel: tpu_custom_call.1
$region0: #{tpu_custom_call.1}
  #allocation0 [shape = 'u32[]', space=smem, size = 0x4, offset = 0x4, fixed_abs, tag = 'smem constant byte address 0x4 - core index']
  #allocation1 [shape = 'u32[72,128]{1,0:T(1,128)}', space=vmem, size = 0x9000, scoped, tag = 'internal scratch']
  #allocation2 [shape = 'f32[1,8,32]{2,1,0:T(8,128)}', space=vmem, size = 0x1000, scoped, tag = 'scratch operand']
  #allocation3 [shape = 'f32[1]{0:T(128)S(6)}', space=smem, size = 0x200, scoped, tag = 'scoped memory for tpu_custom_call.1']
  %s0 = inlined_call_operand.hbm [shape: f32[2,8,32], index: 0, kind: input, shape index: {}]
  %s1 = inlined_call_operand.hbm [shape: f32[2,8,32], index: 1, kind: input, shape index: {}]
  %s2 = inlined_call_operand.hbm [shape: f32[1,32,32], index: 2, kind: input, shape index: {}]
  %s3 = inlined_call_operand.<no memory space> [shape: f32[1], index: 3, kind: input, shape index: {}]
  %s4 = inlined_call_operand.hbm [shape: f32[2,8,128], index: 4, kind: output, shape index: {}]
  %s5 = sld [smem:[#allocation0]]
  $region65: #{tpu_custom_call.1} parent=0
    _
  %s7 = ssub.s32 1, %s5
  %s8 = scalar_select 0, %s7, %s5
  %9 = sst [smem:[#allocation3]] %s3
  $region1: #{tpu_custom_call.1} parent=0
    #allocation4 [shape = 'u8[8192]{0}', space=vmem, size = 0x2000, scoped, tag = 'input window, operand 0']
    #allocation5 [shape = 's32[2]{0}', space=sflag, size = 0x8, scoped, tag = 'scoped memory for tpu_custom_call.1']
    #allocation6 [shape = 's32[2]{0}', space=sflag, size = 0x8, scoped, tag = 'scoped memory for tpu_custom_call.1']
    #allocation7 [shape = 'u8[131072]{0}', space=vmem, size = 0x20000, scoped, tag = 'input window, operand 1']
    #allocation8 [shape = 's32[2]{0}', space=sflag, size = 0x8, scoped, tag = 'scoped memory for tpu_custom_call.1']
    #allocation9 [shape = 'u8[16384]{0}', space=vmem, size = 0x4000, scoped, tag = 'input window, operand 2, single buffered']
    #allocation10 [shape = 'u8[8192]{0}', space=vmem, size = 0x2000, scoped, tag = 'output window, operand 0']
    %10 = vsyncpa [#allocation5], 0
    %s11 = scalar_lea.sflag [#allocation5], 1
    %12 = vsyncpa %s11, 0
    %13 = vsyncpa [#allocation8], 0
    %s14 = scalar_lea.sflag [#allocation8], 1
    %15 = vsyncpa %s14, 0
    %16 = vsyncpa [#allocation6], 0
    %s17 = scalar_lea.sflag [#allocation6], 1
    %18 = vsyncpa %s17, 0
    loop: start=0, step=1, limit=4
    $region2: #{tpu_custom_call.1} parent=1 // loop_pre_header
      _
    $region3: #{tpu_custom_call.1} parent=1 // loop_header
      %s20 = sphi 0, %s24
      %p21 = scmp.ge.s32.totalorder %s20, 4
      %s27 = sphi 0, %s46
      %s28 = sphi 0, %s42
      %s29 = sphi 0, %s38
      %s30 = sphi 0, %s27
      %s31 = sphi 0, %s28
      %s32 = sphi 0, %s29
      %s33 = sphi 0, %s30
      %s34 = sphi 0, %s31
      %s35 = sphi 0, %s32
      %s51 = sphi 0, %s53
      %s54 = sphi 0, %s51
      %s55 = sphi 0, %s54
      %s71 = sphi 0, %s55
      %s79 = sphi 0, %s81
      %s82 = sphi 0, %s79
      %s83 = sphi 0, %s82
      %s99 = sphi 0, %s83
      %s103 = sphi 0, %s103
      %s105 = sphi 0, %s103
      %s106 = sphi 0, %s105
      %s120 = sphi 0, %s106
      %s124 = sphi 0, %s124
      %s126 = sphi 0, %s124
      %s127 = sphi 0, %s126
      %s141 = sphi 0, %s127
      %s151 = sphi 0, %s153
      %s154 = sphi 0, %s151
      %s155 = sphi 0, %s154
      %s171 = sphi 0, %s155
    $region4: #{tpu_custom_call.1} parent=1 // loop_header_branch
      %23 = sbr.rel (%p21) target = $region8
    $region5: #{tpu_custom_call.1} parent=1 // loop_body
      %s25 = ssub.s32 %s20, 1
      %s26 = ssub.s32 %s20, 2
      %s36 = sadd.s32 1, %s29
      %p37 = scmp.ge.s32.totalorder %s36, 1
      %s38 = scalar_select %p37, 0, %s36
      %s39 = sadd.s32 1, %s28
      %s40 = scalar_select %p37, %s39, %s28
      %p41 = scmp.ge.s32.totalorder %s40, 1
      %s42 = scalar_select %p41, 0, %s40
      %s43 = sadd.s32 1, %s27
      %s44 = scalar_select %p41, %s43, %s27
      %p45 = scmp.ge.s32.totalorder %s44, 2
      %s46 = scalar_select %p45, 0, %s44
      %s47 = ssub.s32 %s27, %s46
      %s48 = ssub.s32 %s28, %s42
      %s49 = sor.u32 %s47, %s48
      %p50 = scmp.eq.s32.totalorder %s49, 0
      %s52 = sadd.s32 %s51, 1
      %s53 = scalar_select %p50, %s51, %s52
      %p56 = pneg %p50
      %p57 = scmp.eq.s32.totalorder %s20, 1
      %p58 = por %p56, %p57
      %p59 = scmp.ne.s32.totalorder %s51, %s54
      %p60 = scmp.eq.s32.totalorder %s20, 0
      %p61 = por %p59, %p60
      %p62 = scmp.ne.s32.totalorder %s51, %s54
      %p63 = scmp.eq.s32.totalorder %s25, 1
      %p64 = por %p62, %p63
      %p65 = scmp.ne.s32.totalorder %s54, %s55
      %p66 = scmp.eq.s32.totalorder %s25, 0
      %p67 = por %p65, %p66
      %p68 = scmp.ne.s32.totalorder %s54, %s55
      %p69 = scmp.eq.s32.totalorder %s26, 1
      %p70 = por %p68, %p69
      %p72 = scmp.ne.s32.totalorder %s55, %s71
      %p73 = scmp.eq.s32.totalorder %s26, 0
      %p74 = por %p72, %p73
      %s75 = ssub.s32 %s27, %s46
      %s76 = ssub.s32 %s29, %s38
      %s77 = sor.u32 %s75, %s76
      %p78 = scmp.eq.s32.totalorder %s77, 0
      %s80 = sadd.s32 %s79, 1
      %s81 = scalar_select %p78, %s79, %s80
      %p84 = pneg %p78
      %p85 = scmp.eq.s32.totalorder %s20, 1
      %p86 = por %p84, %p85
      %p87 = scmp.ne.s32.totalorder %s79, %s82
      %p88 = scmp.eq.s32.totalorder %s20, 0
      %p89 = por %p87, %p88
      %p90 = scmp.ne.s32.totalorder %s79, %s82
      %p91 = scmp.eq.s32.totalorder %s25, 1
      %p92 = por %p90, %p91
      %p93 = scmp.ne.s32.totalorder %s82, %s83
      %p94 = scmp.eq.s32.totalorder %s25, 0
      %p95 = por %p93, %p94
      %p96 = scmp.ne.s32.totalorder %s82, %s83
      %p97 = scmp.eq.s32.totalorder %s26, 1
      %p98 = por %p96, %p97
      %p100 = scmp.ne.s32.totalorder %s83, %s99
      %p101 = scmp.eq.s32.totalorder %s26, 0
      %p102 = por %p100, %p101
      %s104 = sadd.s32 %s103, 1
      %p107 = scmp.eq.s32.totalorder %s20, 1
      %p108 = scmp.ne.s32.totalorder %s103, %s105
      %p109 = scmp.eq.s32.totalorder %s20, 0
      %p110 = por %p108, %p109
      %p111 = scmp.ne.s32.totalorder %s103, %s105
      %p112 = scmp.eq.s32.totalorder %s25, 1
      %p113 = por %p111, %p112
      %p114 = scmp.ne.s32.totalorder %s105, %s106
      %p115 = scmp.eq.s32.totalorder %s25, 0
      %p116 = por %p114, %p115
      %p117 = scmp.ne.s32.totalorder %s105, %s106
      %p118 = scmp.eq.s32.totalorder %s26, 1
      %p119 = por %p117, %p118
      %p121 = scmp.ne.s32.totalorder %s106, %s120
      %p122 = scmp.eq.s32.totalorder %s26, 0
      %p123 = por %p121, %p122
      %s125 = sadd.s32 %s124, 1
      %p128 = scmp.eq.s32.totalorder %s20, 1
      %p129 = scmp.ne.s32.totalorder %s124, %s126
      %p130 = scmp.eq.s32.totalorder %s20, 0
      %p131 = por %p129, %p130
      %p132 = scmp.ne.s32.totalorder %s124, %s126
      %p133 = scmp.eq.s32.totalorder %s25, 1
      %p134 = por %p132, %p133
      %p135 = scmp.ne.s32.totalorder %s126, %s127
      %p136 = scmp.eq.s32.totalorder %s25, 0
      %p137 = por %p135, %p136
      %p138 = scmp.ne.s32.totalorder %s126, %s127
      %p139 = scmp.eq.s32.totalorder %s26, 1
      %p140 = por %p138, %p139
      %p142 = scmp.ne.s32.totalorder %s127, %s141
      %p143 = scmp.eq.s32.totalorder %s26, 0
      %p144 = por %p142, %p143
      %s145 = ssub.s32 %s27, %s46
      %s146 = ssub.s32 %s28, %s42
      %s147 = sor.u32 %s145, %s146
      %s148 = ssub.s32 %s29, %s38
      %s149 = sor.u32 %s147, %s148
      %p150 = scmp.eq.s32.totalorder %s149, 0
      %s152 = sadd.s32 %s151, 1
      %s153 = scalar_select %p150, %s151, %s152
      %p156 = pneg %p150
      %p157 = scmp.eq.s32.totalorder %s20, 1
      %p158 = por %p156, %p157
      %p159 = scmp.ne.s32.totalorder %s151, %s154
      %p160 = scmp.eq.s32.totalorder %s20, 0
      %p161 = por %p159, %p160
      %p162 = scmp.ne.s32.totalorder %s151, %s154
      %p163 = scmp.eq.s32.totalorder %s25, 1
      %p164 = por %p162, %p163
      %p165 = scmp.ne.s32.totalorder %s154, %s155
      %p166 = scmp.eq.s32.totalorder %s25, 0
      %p167 = por %p165, %p166
      %p168 = scmp.ne.s32.totalorder %s154, %s155
      %p169 = scmp.eq.s32.totalorder %s26, 1
      %p170 = por %p168, %p169
      %p172 = scmp.ne.s32.totalorder %s155, %s171
      %p173 = scmp.eq.s32.totalorder %s26, 0
      %p174 = por %p172, %p173
      %p175 = scmp.le.s32.totalorder 1, %s20
      %p176 = scmp.lt.s32.totalorder %s20, 3
      %p177 = pnand %p175, %p176
      %p178 = pneg %p177
      // Predicated region
      $region9: #{tpu_custom_call.1} parent=5 // pred_check
        _
      $region10: #{tpu_custom_call.1} parent=5 // pred_check_branch
        %180 = sbr.rel (%p177) target = $region12
      $region11: #{tpu_custom_call.1} parent=5 // pred_region
        %s181 = ssub.s32 %s20, 1
        // Predicated region
        $region13: #{tpu_custom_call.1} parent=11 // pred_check
          %p182 = pneg %p116
        $region14: #{tpu_custom_call.1} parent=11 // pred_check_branch
          %184 = sbr.rel (%p182) target = $region16
        $region15: #{tpu_custom_call.1} parent=11 // pred_region
          %186 = vsyncadd [#allocation8], 0
          %s187 = sshll.u32 %s2, 4
          %s188 = int_to_ptr.hbm [resolvable:$true] %s187
          %s189 = sshll.u32 [#allocation9], 4
          %s190 = int_to_ptr.vmem [resolvable:$true] %s189
          %195 = dma.hbm_to_vmem [thread:$0]  %s188, 512, %s190, [#allocation8], 128, 128, 8
        $region16: #{tpu_custom_call.1} parent=11 // pred_fallthru
          _
        // Predicated region
        $region17: #{tpu_custom_call.1} parent=11 // pred_check
          %p196 = pneg %p137
        $region18: #{tpu_custom_call.1} parent=11 // pred_check_branch
          %198 = sbr.rel (%p196) target = $region20
        $region19: #{tpu_custom_call.1} parent=11 // pred_region
          _
        $region20: #{tpu_custom_call.1} parent=11 // pred_fallthru
          _
      $region12: #{tpu_custom_call.1} parent=5 // pred_fallthru
        _
      %p199 = scmp.lt.s32.totalorder %s20, 2
      // Predicated region
      $region21: #{tpu_custom_call.1} parent=5 // pred_check
        %p200 = pneg %p199
      $region22: #{tpu_custom_call.1} parent=5 // pred_check_branch
        %202 = sbr.rel (%p200) target = $region24
      $region23: #{tpu_custom_call.1} parent=5 // pred_region
        // Predicated region
        $region25: #{tpu_custom_call.1} parent=23 // pred_check
          %p203 = pneg %p61
        $region26: #{tpu_custom_call.1} parent=23 // pred_check_branch
          %205 = sbr.rel (%p203) target = $region28
        $region27: #{tpu_custom_call.1} parent=23 // pred_region
          %s206 = sand.u32 %s51, 1
          %s207 = scalar_lea.sflag [#allocation5], %s206
          %s208 = sand.u32 %s51, 1
          %s209 = smul.addr %s208, 8
          %s210 = scalar_lea.vmem [#allocation4], %s209
          %212 = vsyncadd %s207, 0
          %s213 = sadd.s32 %s28, %s27
          %s214 = smul.addr %s213, 8
          %s215 = scalar_lea.hbm %s0, %s214
          %s217 = sshll.u32 %s215, 4
          %s218 = int_to_ptr.hbm [resolvable:$true] %s217
          %s219 = sshll.u32 %s210, 4
          %s220 = int_to_ptr.vmem [resolvable:$true] %s219
          %222 = dma.hbm_to_vmem [thread:$0]  %s218, 128, %s220, %s207
        $region28: #{tpu_custom_call.1} parent=23 // pred_fallthru
          _
        // Predicated region
        $region29: #{tpu_custom_call.1} parent=23 // pred_check
          %p223 = pneg %p89
        $region30: #{tpu_custom_call.1} parent=23 // pred_check_branch
          %225 = sbr.rel (%p223) target = $region32
        $region31: #{tpu_custom_call.1} parent=23 // pred_region
          %s226 = sand.u32 %s20, 1
          %s227 = scalar_lea.sflag [#allocation8], %s226
          %s228 = sand.u32 %s79, 1
          %s229 = smul.addr %s228, 128
          %s230 = scalar_lea.vmem [#allocation7], %s229
          %s231 = smul.u32 16, %s29
          %s232 = ssub.s32 1, %s231
          %s233 = smul.u32 8, %s232
          %s234 = ssub.s32 128, %s233
          %s235 = sshll.u32 %s234, 4
          %236 = vsyncadd %s227, %s235
          %p237 = scmp.ne.s32.totalorder 0, %s233
          %s238 = sadd.s32 %s231, %s27
          %s239 = smul.addr %s238, 8
          %s240 = scalar_lea.hbm %s1, %s239
          %s241 = smul.u32 8, %s232
          %s242 = sshll.u32 %s240, 4
          %s243 = int_to_ptr.hbm [resolvable:$true] %s242
          %s244 = sshll.u32 %s230, 4
          %s245 = int_to_ptr.vmem [resolvable:$true] %s244
          %s246 = sshll.u32 %s241, 4
          %250 = dma.hbm_to_vmem [thread:$0]  (%p237), %s243, %s246, %s245, %s227, 128, 128, 8
        $region32: #{tpu_custom_call.1} parent=23 // pred_fallthru
          _
      $region24: #{tpu_custom_call.1} parent=5 // pred_fallthru
        _
      %p251 = scmp.le.s32.totalorder 1, %s20
      %p252 = scmp.lt.s32.totalorder %s20, 3
      %p253 = pnand %p251, %p252
      %p254 = pneg %p253
      // Predicated region
      $region33: #{tpu_custom_call.1} parent=5 // pred_check
        _
      $region34: #{tpu_custom_call.1} parent=5 // pred_check_branch
        %256 = sbr.rel (%p253) target = $region36
      $region35: #{tpu_custom_call.1} parent=5 // pred_region
        %s257 = ssub.s32 %s20, 1
        %s258 = sand.u32 %s54, 1
        %s259 = scalar_lea.sflag [#allocation5], %s258
        %s260 = sand.u32 %s54, 1
        %s261 = smul.addr %s260, 8
        %s262 = scalar_lea.vmem [#allocation4], %s261
        // Predicated region
        $region37: #{tpu_custom_call.1} parent=35 // pred_check
          %p263 = pneg %p67
        $region38: #{tpu_custom_call.1} parent=35 // pred_check_branch
          %265 = sbr.rel (%p263) target = $region40
        $region39: #{tpu_custom_call.1} parent=35 // pred_region
          %267 = dma.done %s259, 128
        $region40: #{tpu_custom_call.1} parent=35 // pred_fallthru
          _
        %s268 = sand.u32 %s25, 1
        %s269 = scalar_lea.sflag [#allocation8], %s268
        %s270 = sand.u32 %s82, 1
        %s271 = smul.addr %s270, 128
        %s272 = scalar_lea.vmem [#allocation7], %s271
        // Predicated region
        $region41: #{tpu_custom_call.1} parent=35 // pred_check
          %p273 = pneg %p95
        $region42: #{tpu_custom_call.1} parent=35 // pred_check_branch
          %275 = sbr.rel (%p273) target = $region44
        $region43: #{tpu_custom_call.1} parent=35 // pred_region
          %277 = dma.done %s269, 2048
        $region44: #{tpu_custom_call.1} parent=35 // pred_fallthru
          _
        // Predicated region
        $region45: #{tpu_custom_call.1} parent=35 // pred_check
          %p278 = pneg %p116
        $region46: #{tpu_custom_call.1} parent=35 // pred_check_branch
          %280 = sbr.rel (%p278) target = $region48
        $region47: #{tpu_custom_call.1} parent=35 // pred_region
          %282 = dma.done [#allocation8], 512
        $region48: #{tpu_custom_call.1} parent=35 // pred_fallthru
          _
        %s283 = sand.u32 %s54, 1
        %s284 = scalar_lea.sflag [#allocation5], %s283
        %s285 = sand.u32 %s54, 1
        %s286 = smul.addr %s285, 8
        %s287 = scalar_lea.vmem [#allocation4], %s286
        %p288 = pneg %p67
        %p289 = pneg %p64
        %s290 = sand.u32 %s25, 1
        %s291 = scalar_lea.sflag [#allocation8], %s290
        %s292 = sand.u32 %s82, 1
        %s293 = smul.addr %s292, 128
        %s294 = scalar_lea.vmem [#allocation7], %s293
        %p295 = pneg %p95
        %p296 = pneg %p92
        %p297 = pneg %p116
        %p298 = pneg %p113
        %p299 = pneg %p137
        %p300 = pneg %p134
        %p301 = pneg %p167
        %p302 = pneg %p164
        %s303 = sand.u32 %s154, 1
        %s304 = scalar_lea.sflag [#allocation6], %s303
        %s305 = sand.u32 %s154, 1
        %s306 = smul.addr %s305, 8
        %s307 = scalar_lea.vmem [#allocation10], %s306
        %s308 = smul.u32 16, %s32
        %s309 = ssub.s32 1, %s308
        %s310 = smul.u32 8, %s309
        %p311 = scmp.eq.s32.totalorder %s32, 0
        // Predicated region
        $region49: #{tpu_custom_call.1} parent=35 // pred_check
          %p312 = pneg %p311
        $region50: #{tpu_custom_call.1} parent=35 // pred_check_branch
          %314 = sbr.rel (%p312) target = $region52
        $region51: #{tpu_custom_call.1} parent=35 // pred_region
          %v315 = vld [vmem:[%s262] sm:$0xff]
          %v316 = vld [vmem:[#allocation9] sm:$0xff]
          %v317 = vld [vmem:[#allocation9 + $0x8] sm:$0xff]
          %v318 = vld [vmem:[#allocation9 + $0x10] sm:$0xff]
          %v319 = vld [vmem:[#allocation9 + $0x18] sm:$0xff]
          %vm320 = vcmask 261120
          %v322 = vsel %vm320, %v315, 0
          %324 = vmatpush.msra.mxu0 0.0
          %325 = vmatpush.msra.mxu0 0.0
          %326 = vmatpush.msra.mxu0 0.0
          %327 = vmatpush.msra.mxu0 0.0
          %328 = vmatpush.msra.mxu0 0.0
          %329 = vmatpush.msra.mxu0 0.0
          %330 = vmatpush.msra.mxu0 0.0
          %331 = vmatpush.msra.mxu0 0.0
          %332 = vmatpush.msra.mxu0 0.0
          %333 = vmatpush.msra.mxu0 0.0
          %334 = vmatpush.msra.mxu0 0.0
          %335 = vmatpush.msra.mxu0 0.0
          %336 = vmatpush.msra.mxu0 %v319
          %337 = vmatpush.msra.mxu0 %v318
          %338 = vmatpush.msra.mxu0 %v317
          %339 = vmatpush.msra.mxu0 %v316
          %340 = vmatmul.f32.gmra.mxu0 %v322
          %v341 = vpop.f32.mrf.mxu0
          %v342 = vadd.f32 0.0, %v341
          %343 = vdwg.mxu0
          %344 = vst.msk [vmem:[#allocation2] sm:$0xff] %vm320, %v342
        $region52: #{tpu_custom_call.1} parent=35 // pred_fallthru
          _
        %v345 = vld [vmem:[#allocation2] sm:$0xff]
        %v346 = vld [vmem:[%s272] sm:$0xff]
        %v347 = vld [vmem:[%s272 + $0x8] sm:$0xff]
        %v348 = vld [vmem:[%s272 + $0x10] sm:$0xff]
        %v349 = vld [vmem:[%s272 + $0x18] sm:$0xff]
        %v350 = vld [vmem:[%s272 + $0x20] sm:$0xff]
        %v351 = vld [vmem:[%s272 + $0x28] sm:$0xff]
        %v352 = vld [vmem:[%s272 + $0x30] sm:$0xff]
        %v353 = vld [vmem:[%s272 + $0x38] sm:$0xff]
        %v354 = vld [vmem:[%s272 + $0x40] sm:$0xff]
        %v355 = vld [vmem:[%s272 + $0x48] sm:$0xff]
        %v356 = vld [vmem:[%s272 + $0x50] sm:$0xff]
        %v357 = vld [vmem:[%s272 + $0x58] sm:$0xff]
        %v358 = vld [vmem:[%s272 + $0x60] sm:$0xff]
        %v359 = vld [vmem:[%s272 + $0x68] sm:$0xff]
        %v360 = vld [vmem:[%s272 + $0x70] sm:$0xff]
        %v361 = vld [vmem:[%s272 + $0x78] sm:$0xff]
        %s362 = sld [smem:[#allocation3]]
        %v363 = vstv %s362
        %vm364 = vcmask 261120
        %v366 = vsel %vm364, %v345, 0
        %v369 = vsel %vm364, %v346, 0
        %v372 = vsel %vm364, %v347, 0
        %v375 = vsel %vm364, %v348, 0
        %v378 = vsel %vm364, %v349, 0
        %v381 = vsel %vm364, %v350, 0
        %v384 = vsel %vm364, %v351, 0
        %v387 = vsel %vm364, %v352, 0
        %v390 = vsel %vm364, %v353, 0
        %v393 = vsel %vm364, %v354, 0
        %v396 = vsel %vm364, %v355, 0
        %v399 = vsel %vm364, %v356, 0
        %v402 = vsel %vm364, %v357, 0
        %v405 = vsel %vm364, %v358, 0
        %v408 = vsel %vm364, %v359, 0
        %v411 = vsel %vm364, %v360, 0
        %v414 = vsel %vm364, %v361, 0
        %416 = vmatpush.xpose.msra.mxu0 %v414
        %417 = vmatpush.xpose.msra.mxu0 %v411
        %418 = vmatpush.xpose.msra.mxu0 %v408
        %419 = vmatpush.xpose.msra.mxu0 %v405
        %420 = vmatpush.xpose.msra.mxu0 %v402
        %421 = vmatpush.xpose.msra.mxu0 %v399
        %422 = vmatpush.xpose.msra.mxu0 %v396
        %423 = vmatpush.xpose.msra.mxu0 %v393
        %424 = vmatpush.xpose.msra.mxu0 %v390
        %425 = vmatpush.xpose.msra.mxu0 %v387
        %426 = vmatpush.xpose.msra.mxu0 %v384
        %427 = vmatpush.xpose.msra.mxu0 %v381
        %428 = vmatpush.xpose.msra.mxu0 %v378
        %429 = vmatpush.xpose.msra.mxu0 %v375
        %430 = vmatpush.xpose.msra.mxu0 %v372
        %431 = vmatpush.xpose.msra.mxu0 %v369
        %432 = vmatmul.f32.gmra.mxu0 %v366
        %v433 = vpop.f32.mrf.mxu0
        %v434 = vadd.f32 %v363, %v433
        %435 = vdwg.mxu0
        %436 = vst [vmem:[%s307] sm:$0xff] %v434
        %s437 = sand.u32 %s154, 1
        %s438 = scalar_lea.sflag [#allocation6], %s437
        %s439 = sand.u32 %s154, 1
        %s440 = smul.addr %s439, 8
        %s441 = scalar_lea.vmem [#allocation10], %s440
        // Predicated region
        $region53: #{tpu_custom_call.1} parent=35 // pred_check
          %p442 = pneg %p164
        $region54: #{tpu_custom_call.1} parent=35 // pred_check_branch
          %444 = sbr.rel (%p442) target = $region56
        $region55: #{tpu_custom_call.1} parent=35 // pred_region
          %446 = vsyncadd %s438, 0
          %s447 = sadd.s32 %s32, %s31
          %s448 = sadd.s32 %s447, %s30
          %s449 = smul.addr %s448, 8
          %s450 = scalar_lea.hbm %s4, %s449
          %s452 = sshll.u32 %s441, 4
          %s453 = int_to_ptr.vmem [resolvable:$true] %s452
          %s454 = sshll.u32 %s450, 4
          %s455 = int_to_ptr.hbm [resolvable:$true] %s454
          %457 = dma.vmem_to_hbm [thread:$0]  %s453, 128, %s455, %s438
        $region56: #{tpu_custom_call.1} parent=35 // pred_fallthru
          _
      $region36: #{tpu_custom_call.1} parent=5 // pred_fallthru
        _
      %p458 = scmp.le.s32.totalorder 2, %s20
      // Predicated region
      $region57: #{tpu_custom_call.1} parent=5 // pred_check
        %p459 = pneg %p458
      $region58: #{tpu_custom_call.1} parent=5 // pred_check_branch
        %461 = sbr.rel (%p459) target = $region60
      $region59: #{tpu_custom_call.1} parent=5 // pred_region
        %s462 = ssub.s32 %s20, 2
        // Predicated region
        $region61: #{tpu_custom_call.1} parent=59 // pred_check
          %p463 = pneg %p170
        $region62: #{tpu_custom_call.1} parent=59 // pred_check_branch
          %465 = sbr.rel (%p463) target = $region64
        $region63: #{tpu_custom_call.1} parent=59 // pred_region
          %s466 = sand.u32 %s155, 1
          %s467 = scalar_lea.sflag [#allocation6], %s466
          %s468 = sand.u32 %s155, 1
          %s469 = smul.addr %s468, 8
          %s470 = scalar_lea.vmem [#allocation10], %s469
          %472 = dma.done %s467, 128
        $region64: #{tpu_custom_call.1} parent=59 // pred_fallthru
          _
      $region60: #{tpu_custom_call.1} parent=5 // pred_fallthru
        _
    $region6: #{tpu_custom_call.1} parent=1 // loop_footer
      %s24 = sadd.s32 1, %s20
    $region7: #{tpu_custom_call.1} parent=1 // loop_footer_branch
      %19 = sbr.rel target = $region3
    $region8: #{tpu_custom_call.1} parent=1 // loop_exit
      _
    %473 = vsyncpa [#allocation5], 1
    %s474 = scalar_lea.sflag [#allocation5], 1
    %475 = vsyncpa %s474, 1
    %476 = vsyncpa [#allocation8], 1
    %s477 = scalar_lea.sflag [#allocation8], 1
    %478 = vsyncpa %s477, 1
    %479 = vsyncpa [#allocation6], 1
    %s480 = scalar_lea.sflag [#allocation6], 1
    %481 = vsyncpa %s480, 1

</llo_original>
